<compile_context>
chip_gen: v5e
topology: v5e:2x2
jax: 0.10.0
libtpu: 0.0.40
codegen_flags: <defaults>
</compile_context>

<pallas_src>
import functools
import numpy as np
import jax
import jax.numpy as jnp
from jax.experimental import pallas as pl
from jax.experimental.pallas import tpu as pltpu


# --------------------- host-side interpolation matrices ----------------------

def _interp_matrix_1d(in_size, multiplier, method):
    """(out, in) matrix reproducing torch.nn.functional.interpolate along one
    axis (align_corners=False, scale_factor given)."""
    out_size = int(np.floor(in_size * multiplier))
    assert out_size >= 1, "rescaled size must be >= 1"
    scale = 1.0 / multiplier
    m = np.zeros((out_size, in_size), dtype=np.float64)
    if method == "nearest":
        # TODO(synk): some torch versions use floor(i * in/out); differs only
        # for multipliers whose reciprocal is not exact — validate if needed.
        for i in range(out_size):
            src = min(int(np.floor(i * scale)), in_size - 1)
            m[i, src] = 1.0
    elif method in ("linear", "bilinear", "trilinear"):
        for i in range(out_size):
            src = max(scale * (i + 0.5) - 0.5, 0.0)
            i0 = min(int(np.floor(src)), in_size - 1)
            i1 = min(i0 + 1, in_size - 1)
            w1 = src - i0
            m[i, i0] += 1.0 - w1
            m[i, i1] += w1
    else:
        # TODO(synk): 'bicubic' and 'area' interpolation matrices not implemented.
        raise NotImplementedError(f"method {method!r} not supported")
    return m


def _composed_interp_matrices(h, w, n_stages, multiplier, method):
    """Compose n_stages of separable 1-D interpolation into (U,H) and (V,W)."""
    wh = np.eye(h, dtype=np.float64)
    ww = np.eye(w, dtype=np.float64)
    for _ in range(n_stages):
        wh = _interp_matrix_1d(wh.shape[0], multiplier, method) @ wh
        ww = _interp_matrix_1d(ww.shape[0], multiplier, method) @ ww
    return wh, ww                                   # (U, H), (V, W)


# ------------------------------- init / params --------------------------------

def init_spatial_rescaler(key, *, n_stages=1, method="bilinear", multiplier=0.5,
                          in_channels=3, out_channels=None, bias=False,
                          in_hw=(16, 16), compute_dtype=jnp.bfloat16):
    """Analogue of SpatialRescaler.__init__: precompute separable operators."""
    assert n_stages >= 0
    h, w = in_hw
    wh, ww = _composed_interp_matrices(h, w, n_stages, multiplier, method)
    u, v = wh.shape[0], ww.shape[0]

    if out_channels is not None:
        k_w, k_b = jax.random.split(key)
        conv_w = 0.1 * jax.random.normal(k_w, (out_channels, in_channels), jnp.float32)
        conv_b = (0.1 * jax.random.normal(k_b, (out_channels,), jnp.float32)
                  if bias else None)
        o = out_channels
    else:
        conv_w, conv_b = None, None
        o = in_channels

    return {
        # MXU operands in compute dtype; the 1x1-conv mix runs on the VPU in
        # f32 with its scalars held in SMEM, so M / bias stay f32.
        "Wh": jnp.asarray(wh, compute_dtype),        # (U, H) row interp
        "WwT": jnp.asarray(ww.T, compute_dtype),     # (W, V) column interp
        "M": conv_w,                                  # (O, C) f32 or None
        "bias": conv_b,                               # (O,)   f32 or None
        # static python config
        "compute_dtype": compute_dtype,
        "out_channels": o, "out_h": u, "out_w": v,
        "in_channels": in_channels, "in_hw": (h, w),
        "n_stages": n_stages, "method": method, "multiplier": multiplier,
    }


# -------------------------------- Pallas kernel --------------------------------

def _spatial_rescaler_kernel(x_ref, wh_ref, wwt_ref, *rest,
                             col_first, remap, has_bias):
    if remap:
        if has_bias:
            m_ref, b_ref, o_ref = rest
        else:
            m_ref, o_ref = rest
            b_ref = None
    else:
        (o_ref,) = rest
        m_ref = b_ref = None

    bt, c, h, w = x_ref.shape
    u = wh_ref.shape[0]
    v = wwt_ref.shape[1]
    n = bt * c
    cdt = wh_ref.dtype                               # MXU input dtype (bf16/f32)

    x = x_ref[...]                                   # (Bt, C, H, W)
    wh_b = jnp.broadcast_to(wh_ref[...], (n, u, h))  # shared row-interp operand

    if col_first:
        # (1) column interp: one big lane-dense MXU matmul over all Bt*C*H rows.
        if h % 8 == 0:
            t1 = jnp.dot(x.reshape(n * h, w), wwt_ref[...],
                         preferred_element_type=jnp.float32).reshape(n, h, v)
        else:  # sublane-unaligned merge would relayout -> keep it batched
            wwt_b = jnp.broadcast_to(wwt_ref[...], (n, w, v))
            t1 = jnp.einsum('nhw,nwv->nhv', x.reshape(n, h, w), wwt_b,
                            preferred_element_type=jnp.float32)
        # (2) row interp: Bt*C small batched matmuls (no kron -> no C x waste).
        t2 = jnp.einsum('nuh,nhv->nuv', wh_b, t1.astype(cdt),
                        preferred_element_type=jnp.float32)           # (N,U,V)
    else:
        # (1) row interp first (cheaper contraction for this shape).
        t1 = jnp.einsum('nuh,nhw->nuw', wh_b, x.reshape(n, h, w),
                        preferred_element_type=jnp.float32).astype(cdt)
        # (2) column interp: big MXU matmul when the merge stays sublane-aligned.
        if u % 8 == 0:
            t2 = jnp.dot(t1.reshape(n * u, w), wwt_ref[...],
                         preferred_element_type=jnp.float32).reshape(n, u, v)
        else:
            wwt_b = jnp.broadcast_to(wwt_ref[...], (n, w, v))
            t2 = jnp.einsum('nuw,nwv->nuv', t1, wwt_b,
                            preferred_element_type=jnp.float32)

    t2 = t2.reshape(bt, c, u, v)                     # leading-dim split: free

    if not remap:
        o_ref[...] = t2.astype(o_ref.dtype)
        return

    # 1x1-conv channel mix (+ fused bias) as a VPU weighted sum of C planes.
    # O and C are tiny for SpatialRescaler, so this avoids any lane-dim
    # relayout of t2 and keeps the MXU for the interpolation matmuls.
    o_ch = o_ref.shape[1]
    for oc in range(o_ch):
        acc = m_ref[oc, 0] * t2[:, 0]
        for cc in range(1, c):
            acc = acc + m_ref[oc, cc] * t2[:, cc]
        if has_bias:
            acc = acc + b_ref[oc]
        o_ref[:, oc] = acc.astype(o_ref.dtype)


# ---------------------------------- wrapper ------------------------------------

def spatial_rescaler_forward(params, x):
    """x: f32 [B, C, H, W] -> f32 [B, O, U, V]; mirrors SpatialRescaler.forward."""
    b, c, h, w = x.shape
    assert (c, (h, w)) == (params["in_channels"], params["in_hw"])
    o, u, v = params["out_channels"], params["out_h"], params["out_w"]
    cdt = params["compute_dtype"]
    wh, wwt = params["Wh"], params["WwT"]
    m, bias = params["M"], params["bias"]
    remap, has_bias = m is not None, bias is not None

    # Trace-time contraction-order choice: run the cheaper one first so the
    # live intermediate is the smaller one.
    col_first = h * v * (w + u) <= u * w * (h + v)

    # Batch-tile size: fill the MXU row dim (~256 sublanes on v6e/v7x) without
    # busting a conservative VMEM budget for the double-buffered blocks.
    in_b = c * h * w * jnp.dtype(cdt).itemsize
    out_b = o * u * v * 4
    bt = min(b,
             max(1, -(-256 // max(1, c * (h if col_first else u)))),   # MXU fill
             max(1, (8 << 20) // max(1, 2 * (in_b + out_b))))          # VMEM cap
    while b % bt:                      # keep blocks exact (no ragged batch tile)
        bt -= 1
    grid = (b // bt,)

    in_specs = [
        pl.BlockSpec((bt, c, h, w), lambda i: (i, 0, 0, 0)),   # activations
        pl.BlockSpec((u, h), lambda i: (0, 0)),                # row interp (resident)
        pl.BlockSpec((w, v), lambda i: (0, 0)),                # col interp (resident)
    ]
    # bf16 activations halve the per-block VMEM/DMA (in production x arrives
    # bf16 upstream; here the cast is a cheap XLA op on a small array).
    args = [x.astype(cdt), wh, wwt]
    if remap:
        in_specs.append(pl.BlockSpec(memory_space=pltpu.MemorySpace.SMEM))
        args.append(m)
        if has_bias:
            in_specs.append(pl.BlockSpec(memory_space=pltpu.MemorySpace.SMEM))
            args.append(bias)

    # Only raise the scoped-VMEM limit when the block budget would not fit the
    # smallest default (v5e: 16 MiB scoped); never lower it.
    need = 2 * bt * (in_b + out_b) + (wh.size + wwt.size) * jnp.dtype(cdt).itemsize
    vmem_limit = int(min(need + (4 << 20), 100 << 20)) if need > (12 << 20) else None

    kernel = functools.partial(_spatial_rescaler_kernel, col_first=col_first,
                               remap=remap, has_bias=has_bias)
    return pl.pallas_call(
        kernel,
        out_shape=jax.ShapeDtypeStruct((b, o, u, v), jnp.float32),
        grid=grid,
        in_specs=in_specs,
        out_specs=pl.BlockSpec((bt, o, u, v), lambda i: (i, 0, 0, 0)),
        compiler_params=pltpu.CompilerParams(
            dimension_semantics=("parallel",),    # batch-tile axis -> megacore
            vmem_limit_bytes=vmem_limit),
    )(*args)


# ----------------------- stage-by-stage numpy reference ------------------------

def _reference_forward(x, params):
    """Mirrors the PyTorch forward loop (interpolate per stage + 1x1 conv),
    independent of the composed/fused construction used by the kernel."""
    y = np.asarray(x, np.float64)
    for _ in range(params["n_stages"]):
        mh = _interp_matrix_1d(y.shape[2], params["multiplier"], params["method"])
        mw = _interp_matrix_1d(y.shape[3], params["multiplier"], params["method"])
        y = np.einsum("uh,bchw,vw->bcuv", mh, y, mw)
    if params["M"] is not None:
        y = np.einsum("oc,bchw->bohw", np.asarray(params["M"], np.float64), y)
        if params["bias"] is not None:
            y = y + np.asarray(params["bias"], np.float64)[None, :, None, None]
    return y


# ------------------------------------ main --------------------------------------

if __name__ == "__main__":
    key = jax.random.PRNGKey(0)
    k_x, k_p, k_x2 = jax.random.split(key, 3)

    B, C, H, W = 2, 4, 16, 16
    x = jax.random.normal(k_x, (B, C, H, W), dtype=jnp.float32)

    # Config A: module defaults (1 bilinear stage, x0.5, no remap), f32 compute.
    p_a = init_spatial_rescaler(k_p, n_stages=1, method="bilinear", multiplier=0.5,
                                in_channels=C, out_channels=None, bias=False,
                                in_hw=(H, W), compute_dtype=jnp.float32)
    y_a = jax.block_until_ready(jax.jit(lambda t: spatial_rescaler_forward(p_a, t))(x))
    assert y_a.shape == (B, C, H // 2, W // 2)
    assert bool(jnp.all(jnp.isfinite(y_a)))
    assert np.allclose(np.asarray(y_a), _reference_forward(x, p_a),
                       atol=1e-4, rtol=1e-4)

    # Config B: 2 bilinear stages + 1x1-conv remap 4 -> 8 channels with bias,
    # bf16 MXU operands / f32 accumulation (perf path; looser tolerance).
    p_b = init_spatial_rescaler(k_p, n_stages=2, method="bilinear", multiplier=0.5,
                                in_channels=C, out_channels=8, bias=True,
                                in_hw=(H, W), compute_dtype=jnp.bfloat16)
    y_b = jax.block_until_ready(jax.jit(lambda t: spatial_rescaler_forward(p_b, t))(x))
    assert y_b.shape == (B, 8, H // 4, W // 4)
    assert bool(jnp.all(jnp.isfinite(y_b)))
    assert np.allclose(np.asarray(y_b), _reference_forward(x, p_b),
                       atol=5e-2, rtol=5e-2)

    # Config C: skewed spatial shape + nearest mode -> exercises the
    # row-interp-first ordering and the nearest matrices.
    H2, W2 = 8, 32
    x2 = jax.random.normal(k_x2, (B, C, H2, W2), dtype=jnp.float32)
    p_c = init_spatial_rescaler(k_p, n_stages=1, method="nearest", multiplier=0.5,
                                in_channels=C, out_channels=None, bias=False,
                                in_hw=(H2, W2), compute_dtype=jnp.bfloat16)
    y_c = jax.block_until_ready(jax.jit(lambda t: spatial_rescaler_forward(p_c, t))(x2))
    assert y_c.shape == (B, C, H2 // 2, W2 // 2)
    assert bool(jnp.all(jnp.isfinite(y_c)))
    assert np.allclose(np.asarray(y_c), _reference_forward(x2, p_c),
                       atol=5e-2, rtol=5e-2)

    print("KERNEL_OK")
</pallas_src>

<mosaic_0001>
module attributes {stable_mosaic.version = 11 : i64} {
  func.func @_spatial_rescaler_kernel(%arg0: i32, %arg1: memref<2x4x16x16xf32, #tpu.memory_space<vmem>>, %arg2: memref<8x16xf32, #tpu.memory_space<vmem>>, %arg3: memref<16x8xf32, #tpu.memory_space<vmem>>, %arg4: memref<2x4x8x8xf32, #tpu.memory_space<vmem>>) attributes {dimension_semantics = [#tpu.dimension_semantics<parallel>], iteration_bounds = array<i64: 1>, scalar_prefetch = 0 : i64, scratch_operands = 0 : i64, tpu.core_type = #tpu.core_type<tc>, window_params = [{transform_indices = @transform_0, window_bounds = array<i64: 2, 4, 16, 16>}, {pipeline_mode = #tpu.pipeline_mode<synchronous>, transform_indices = @transform_1, window_bounds = array<i64: 8, 16>}, {pipeline_mode = #tpu.pipeline_mode<synchronous>, transform_indices = @transform_2, window_bounds = array<i64: 16, 8>}, {transform_indices = @transform_3, window_bounds = array<i64: 2, 4, 8, 8>}]} {
    %c0 = arith.constant 0 : index
    %c0_0 = arith.constant 0 : index
    %c0_1 = arith.constant 0 : index
    %c0_2 = arith.constant 0 : index
    %0 = vector.load %arg1[%c0, %c0_0, %c0_1, %c0_2] : memref<2x4x16x16xf32, #tpu.memory_space<vmem>>, vector<2x4x16x16xf32>
    %c0_3 = arith.constant 0 : index
    %c0_4 = arith.constant 0 : index
    %1 = vector.load %arg2[%c0_3, %c0_4] : memref<8x16xf32, #tpu.memory_space<vmem>>, vector<8x16xf32>
    %2 = vector.shape_cast %1 : vector<8x16xf32> to vector<1x8x16xf32>
    %3 = vector.broadcast %2 : vector<1x8x16xf32> to vector<8x8x16xf32>
    %4 = vector.shape_cast %0 : vector<2x4x16x16xf32> to vector<128x16xf32>
    %c0_5 = arith.constant 0 : index
    %c0_6 = arith.constant 0 : index
    %5 = vector.load %arg3[%c0_5, %c0_6] : memref<16x8xf32, #tpu.memory_space<vmem>>, vector<16x8xf32>
    %cst = arith.constant dense<0.000000e+00> : vector<128x8xf32>
    %6 = tpu.matmul %4, %5, %cst {dimension_numbers = #tpu.dot_dimension_numbers<[1], [0], [0], [1], [0, 0, 1, 1], [], []>} : vector<128x16xf32>, vector<16x8xf32>, vector<128x8xf32> -> vector<128x8xf32>
    %7 = vector.shape_cast %6 : vector<128x8xf32> to vector<8x16x8xf32>
    "tpu.trace_start"() <{level = 10 : i32, message = "nuh,nhv->nuv"}> : () -> ()
    %cst_7 = arith.constant dense<0.000000e+00> : vector<8x8x8xf32>
    %8 = tpu.matmul %3, %7, %cst_7 {dimension_numbers = #tpu.dot_dimension_numbers<[2], [1], [1], [2], [0, 0, 0, 1, 1, 2], [0], [0]>} : vector<8x8x16xf32>, vector<8x16x8xf32>, vector<8x8x8xf32> -> vector<8x8x8xf32>
    "tpu.trace_stop"() : () -> ()
    %9 = vector.shape_cast %8 : vector<8x8x8xf32> to vector<2x4x8x8xf32>
    %c0_8 = arith.constant 0 : index
    %c0_9 = arith.constant 0 : index
    %c0_10 = arith.constant 0 : index
    %c0_11 = arith.constant 0 : index
    %10 = vector.load %arg4[%c0_8, %c0_9, %c0_10, %c0_11] : memref<2x4x8x8xf32, #tpu.memory_space<vmem>>, vector<2x4x8x8xf32>
    tpu.vector_store %arg4[%c0_8, %c0_9, %c0_10, %c0_11], %9 {strides = array<i32>} : memref<2x4x8x8xf32, #tpu.memory_space<vmem>>, vector<2x4x8x8xf32>,
    return
  }
  func.func @transform_0(%arg0: i32) -> (i32, i32, i32, i32) {
    %c0_i32 = arith.constant 0 : i32
    %c0_i32_0 = arith.constant 0 : i32
    %c0_i32_1 = arith.constant 0 : i32
    %c0_i32_2 = arith.constant 0 : i32
    return %arg0, %c0_i32, %c0_i32_0, %c0_i32_1 : i32, i32, i32, i32
  }
  func.func @transform_1(%arg0: i32) -> (i32, i32) {
    %c0_i32 = arith.constant 0 : i32
    %c0_i32_0 = arith.constant 0 : i32
    %c0_i32_1 = arith.constant 0 : i32
    return %c0_i32, %c0_i32_0 : i32, i32
  }
  func.func @transform_2(%arg0: i32) -> (i32, i32) {
    %c0_i32 = arith.constant 0 : i32
    %c0_i32_0 = arith.constant 0 : i32
    %c0_i32_1 = arith.constant 0 : i32
    return %c0_i32, %c0_i32_0 : i32, i32
  }
  func.func @transform_3(%arg0: i32) -> (i32, i32, i32, i32) {
    %c0_i32 = arith.constant 0 : i32
    %c0_i32_0 = arith.constant 0 : i32
    %c0_i32_1 = arith.constant 0 : i32
    %c0_i32_2 = arith.constant 0 : i32
    return %arg0, %c0_i32, %c0_i32_0, %c0_i32_1 : i32, i32, i32, i32
  }
}

</mosaic_0001>

<llo_original>
// kernel: _lambda_.1
$region0: #{_lambda_.1}
  #allocation0 [shape = 'u32[]', space=smem, size = 0x4, offset = 0x4, fixed_abs, tag = 'smem constant byte address 0x4 - core index']
  #allocation1 [shape = 'u32[72,128]{1,0:T(1,128)}', space=vmem, size = 0x9000, scoped, tag = 'internal scratch']
  %s0 = inlined_call_operand.hbm [shape: f32[2,4,16,16], index: 0, kind: input, shape index: {}]
  %s1 = inlined_call_operand.hbm [shape: f32[8,16], index: 1, kind: input, shape index: {}]
  %s2 = inlined_call_operand.hbm [shape: f32[16,8], index: 2, kind: input, shape index: {}]
  %s3 = inlined_call_operand.hbm [shape: f32[2,4,8,8], index: 3, kind: output, shape index: {}]
  %s4 = sld [smem:[#allocation0]]
  $region34: #{_lambda_.1} parent=0
    _
  %s6 = ssub.s32 1, %s4
  %s7 = scalar_select 0, %s6, %s4
  $region1: #{_lambda_.1} parent=0
    #allocation2 [shape = 'u8[65536]{0}', space=vmem, size = 0x10000, scoped, tag = 'input window, operand 0, single buffered']
    #allocation3 [shape = 's32[1]{0}', space=sflag, size = 0x4, scoped, tag = 'scoped memory for _lambda_.1']
    #allocation4 [shape = 's32[1]{0}', space=sflag, size = 0x4, scoped, tag = 'scoped memory for _lambda_.1']
    #allocation5 [shape = 'u8[4096]{0}', space=vmem, size = 0x1000, scoped, tag = 'input window, operand 1, single buffered']
    #allocation6 [shape = 's32[1]{0}', space=sflag, size = 0x4, scoped, tag = 'scoped memory for _lambda_.1']
    #allocation7 [shape = 'u8[8192]{0}', space=vmem, size = 0x2000, scoped, tag = 'input window, operand 2, single buffered']
    #allocation8 [shape = 'u8[32768]{0}', space=vmem, size = 0x8000, scoped, tag = 'output window, operand 0, single buffered']
    %8 = vsyncpa [#allocation3], 0
    %9 = vsyncpa [#allocation6], 0
    %10 = vsyncpa [#allocation4], 0
    // Predicated region
    $region2: #{_lambda_.1} parent=1 // pred_check
      _
    $region3: #{_lambda_.1} parent=1 // pred_check_branch
      %12 = sbr.rel (0) target = $region5
    $region4: #{_lambda_.1} parent=1 // pred_region
      %14 = vsyncadd [#allocation3], 0
      %s15 = sshll.u32 %s0, 4
      %s16 = int_to_ptr.hbm [resolvable:$true] %s15
      %s17 = sshll.u32 [#allocation2], 4
      %s18 = int_to_ptr.vmem [resolvable:$true] %s17
      %23 = dma.hbm_to_vmem [thread:$0]  %s16, 2048, %s18, [#allocation3], 128, 128, 8
    $region5: #{_lambda_.1} parent=1 // pred_fallthru
      _
    // Predicated region
    $region6: #{_lambda_.1} parent=1 // pred_check
      _
    $region7: #{_lambda_.1} parent=1 // pred_check_branch
      %25 = sbr.rel (0) target = $region9
    $region8: #{_lambda_.1} parent=1 // pred_region
      %27 = vsyncadd [#allocation6], 0
      %s29 = sshll.u32 %s1, 4
      %s30 = int_to_ptr.hbm [resolvable:$true] %s29
      %s31 = sshll.u32 [#allocation5], 4
      %s32 = int_to_ptr.vmem [resolvable:$true] %s31
      %34 = dma.hbm_to_vmem [thread:$0]  %s30, 128, %s32, [#allocation6]
    $region9: #{_lambda_.1} parent=1 // pred_fallthru
      _
    // Predicated region
    $region10: #{_lambda_.1} parent=1 // pred_check
      _
    $region11: #{_lambda_.1} parent=1 // pred_check_branch
      %36 = sbr.rel (0) target = $region13
    $region12: #{_lambda_.1} parent=1 // pred_region
      %38 = vsyncadd [#allocation6], 0
      %s39 = sshll.u32 %s2, 4
      %s40 = int_to_ptr.hbm [resolvable:$true] %s39
      %s41 = sshll.u32 [#allocation7], 4
      %s42 = int_to_ptr.vmem [resolvable:$true] %s41
      %47 = dma.hbm_to_vmem [thread:$0]  %s40, 256, %s42, [#allocation6], 128, 128, 8
    $region13: #{_lambda_.1} parent=1 // pred_fallthru
      _
    // Predicated region
    $region14: #{_lambda_.1} parent=1 // pred_check
      _
    $region15: #{_lambda_.1} parent=1 // pred_check_branch
      %49 = sbr.rel (0) target = $region17
    $region16: #{_lambda_.1} parent=1 // pred_region
      %51 = dma.done [#allocation3], 2048
    $region17: #{_lambda_.1} parent=1 // pred_fallthru
      _
    // Predicated region
    $region18: #{_lambda_.1} parent=1 // pred_check
      _
    $region19: #{_lambda_.1} parent=1 // pred_check_branch
      %53 = sbr.rel (0) target = $region21
    $region20: #{_lambda_.1} parent=1 // pred_region
      %55 = dma.done [#allocation6], 128
    $region21: #{_lambda_.1} parent=1 // pred_fallthru
      _
    // Predicated region
    $region22: #{_lambda_.1} parent=1 // pred_check
      _
    $region23: #{_lambda_.1} parent=1 // pred_check_branch
      %57 = sbr.rel (0) target = $region25
    $region24: #{_lambda_.1} parent=1 // pred_region
      %59 = dma.done [#allocation6], 256
    $region25: #{_lambda_.1} parent=1 // pred_fallthru
      _
    %v60 = vld [vmem:[#allocation2] sm:$0xff]
    %v61 = vld [vmem:[#allocation2 + $0x8] sm:$0xff]
    %v62 = vld [vmem:[#allocation2 + $0x10] sm:$0xff]
    %v63 = vld [vmem:[#allocation2 + $0x18] sm:$0xff]
    %v64 = vld [vmem:[#allocation2 + $0x20] sm:$0xff]
    %v65 = vld [vmem:[#allocation2 + $0x28] sm:$0xff]
    %v66 = vld [vmem:[#allocation2 + $0x30] sm:$0xff]
    %v67 = vld [vmem:[#allocation2 + $0x38] sm:$0xff]
    %v68 = vld [vmem:[#allocation2 + $0x40] sm:$0xff]
    %v69 = vld [vmem:[#allocation2 + $0x48] sm:$0xff]
    %v70 = vld [vmem:[#allocation2 + $0x50] sm:$0xff]
    %v71 = vld [vmem:[#allocation2 + $0x58] sm:$0xff]
    %v72 = vld [vmem:[#allocation2 + $0x60] sm:$0xff]
    %v73 = vld [vmem:[#allocation2 + $0x68] sm:$0xff]
    %v74 = vld [vmem:[#allocation2 + $0x70] sm:$0xff]
    %v75 = vld [vmem:[#allocation2 + $0x78] sm:$0xff]
    %v76 = vld [vmem:[#allocation5] sm:$0xff]
    %v77 = vld [vmem:[#allocation7] sm:$0xff]
    %v78 = vld [vmem:[#allocation7 + $0x8] sm:$0xff]
    %vm79 = vcmask 130048
    %v81 = vsel %vm79, %v60, 0
    %v84 = vsel %vm79, %v61, 0
    %v87 = vsel %vm79, %v62, 0
    %v90 = vsel %vm79, %v63, 0
    %v93 = vsel %vm79, %v64, 0
    %v96 = vsel %vm79, %v65, 0
    %v99 = vsel %vm79, %v66, 0
    %v102 = vsel %vm79, %v67, 0
    %v105 = vsel %vm79, %v68, 0
    %v108 = vsel %vm79, %v69, 0
    %v111 = vsel %vm79, %v70, 0
    %v114 = vsel %vm79, %v71, 0
    %v117 = vsel %vm79, %v72, 0
    %v120 = vsel %vm79, %v73, 0
    %v123 = vsel %vm79, %v74, 0
    %v126 = vsel %vm79, %v75, 0
    %128 = vmatpush.msra.mxu0 0.0
    %129 = vmatpush.msra.mxu0 0.0
    %130 = vmatpush.msra.mxu0 0.0
    %131 = vmatpush.msra.mxu0 0.0
    %132 = vmatpush.msra.mxu0 0.0
    %133 = vmatpush.msra.mxu0 0.0
    %134 = vmatpush.msra.mxu0 0.0
    %135 = vmatpush.msra.mxu0 0.0
    %136 = vmatpush.msra.mxu0 0.0
    %137 = vmatpush.msra.mxu0 0.0
    %138 = vmatpush.msra.mxu0 0.0
    %139 = vmatpush.msra.mxu0 0.0
    %140 = vmatpush.msra.mxu0 0.0
    %141 = vmatpush.msra.mxu0 0.0
    %142 = vmatpush.msra.mxu0 %v78
    %143 = vmatpush.msra.mxu0 %v77
    %144 = vmatmul.f32.gmra.mxu0 %v81
    %v145 = vpop.f32.mrf.mxu0
    %v146 = vadd.f32 0.0, %v145
    %147 = vmatmul.f32.gmra.mxu0 %v84
    %v148 = vpop.f32.mrf.mxu0
    %v149 = vadd.f32 0.0, %v148
    %150 = vmatmul.f32.gmra.mxu0 %v87
    %v151 = vpop.f32.mrf.mxu0
    %v152 = vadd.f32 0.0, %v151
    %153 = vmatmul.f32.gmra.mxu0 %v90
    %v154 = vpop.f32.mrf.mxu0
    %v155 = vadd.f32 0.0, %v154
    %156 = vmatmul.f32.gmra.mxu0 %v93
    %v157 = vpop.f32.mrf.mxu0
    %v158 = vadd.f32 0.0, %v157
    %159 = vmatmul.f32.gmra.mxu0 %v96
    %v160 = vpop.f32.mrf.mxu0
    %v161 = vadd.f32 0.0, %v160
    %162 = vmatmul.f32.gmra.mxu0 %v99
    %v163 = vpop.f32.mrf.mxu0
    %v164 = vadd.f32 0.0, %v163
    %165 = vmatmul.f32.gmra.mxu0 %v102
    %v166 = vpop.f32.mrf.mxu0
    %v167 = vadd.f32 0.0, %v166
    %168 = vmatmul.f32.gmra.mxu0 %v105
    %v169 = vpop.f32.mrf.mxu0
    %v170 = vadd.f32 0.0, %v169
    %171 = vmatmul.f32.gmra.mxu0 %v108
    %v172 = vpop.f32.mrf.mxu0
    %v173 = vadd.f32 0.0, %v172
    %174 = vmatmul.f32.gmra.mxu0 %v111
    %v175 = vpop.f32.mrf.mxu0
    %v176 = vadd.f32 0.0, %v175
    %177 = vmatmul.f32.gmra.mxu0 %v114
    %v178 = vpop.f32.mrf.mxu0
    %v179 = vadd.f32 0.0, %v178
    %180 = vmatmul.f32.gmra.mxu0 %v117
    %v181 = vpop.f32.mrf.mxu0
    %v182 = vadd.f32 0.0, %v181
    %183 = vmatmul.f32.gmra.mxu0 %v120
    %v184 = vpop.f32.mrf.mxu0
    %v185 = vadd.f32 0.0, %v184
    %186 = vmatmul.f32.gmra.mxu0 %v123
    %v187 = vpop.f32.mrf.mxu0
    %v188 = vadd.f32 0.0, %v187
    %189 = vmatmul.f32.gmra.mxu0 %v126
    %v190 = vpop.f32.mrf.mxu0
    %v191 = vadd.f32 0.0, %v190
    %192 = vdwg.mxu0
    %v194 = vsel %vm79, %v76, 0
    %196 = vmatpush.msra.mxu0 0.0
    %197 = vmatpush.msra.mxu0 0.0
    %198 = vmatpush.msra.mxu0 0.0
    %199 = vmatpush.msra.mxu0 0.0
    %200 = vmatpush.msra.mxu0 0.0
    %201 = vmatpush.msra.mxu0 0.0
    %202 = vmatpush.msra.mxu0 0.0
    %203 = vmatpush.msra.mxu0 0.0
    %204 = vmatpush.msra.mxu0 0.0
    %205 = vmatpush.msra.mxu0 0.0
    %206 = vmatpush.msra.mxu0 0.0
    %207 = vmatpush.msra.mxu0 0.0
    %208 = vmatpush.msra.mxu0 0.0
    %209 = vmatpush.msra.mxu0 0.0
    %210 = vmatpush.msra.mxu0 %v149
    %211 = vmatpush.msra.mxu0 %v146
    %212 = vmatmul.f32.gmra.mxu0 %v194
    %v213 = vpop.f32.mrf.mxu0
    %v214 = vadd.f32 0.0, %v213
    %215 = vdwg.mxu0
    %216 = vmatpush.msra.mxu0 0.0
    %217 = vmatpush.msra.mxu0 0.0
    %218 = vmatpush.msra.mxu0 0.0
    %219 = vmatpush.msra.mxu0 0.0
    %220 = vmatpush.msra.mxu0 0.0
    %221 = vmatpush.msra.mxu0 0.0
    %222 = vmatpush.msra.mxu0 0.0
    %223 = vmatpush.msra.mxu0 0.0
    %224 = vmatpush.msra.mxu0 0.0
    %225 = vmatpush.msra.mxu0 0.0
    %226 = vmatpush.msra.mxu0 0.0
    %227 = vmatpush.msra.mxu0 0.0
    %228 = vmatpush.msra.mxu0 0.0
    %229 = vmatpush.msra.mxu0 0.0
    %230 = vmatpush.msra.mxu0 %v155
    %231 = vmatpush.msra.mxu0 %v152
    %232 = vmatmul.f32.gmra.mxu0 %v194
    %v233 = vpop.f32.mrf.mxu0
    %v234 = vadd.f32 0.0, %v233
    %235 = vdwg.mxu0
    %236 = vmatpush.msra.mxu0 0.0
    %237 = vmatpush.msra.mxu0 0.0
    %238 = vmatpush.msra.mxu0 0.0
    %239 = vmatpush.msra.mxu0 0.0
    %240 = vmatpush.msra.mxu0 0.0
    %241 = vmatpush.msra.mxu0 0.0
    %242 = vmatpush.msra.mxu0 0.0
    %243 = vmatpush.msra.mxu0 0.0
    %244 = vmatpush.msra.mxu0 0.0
    %245 = vmatpush.msra.mxu0 0.0
    %246 = vmatpush.msra.mxu0 0.0
    %247 = vmatpush.msra.mxu0 0.0
    %248 = vmatpush.msra.mxu0 0.0
    %249 = vmatpush.msra.mxu0 0.0
    %250 = vmatpush.msra.mxu0 %v161
    %251 = vmatpush.msra.mxu0 %v158
    %252 = vmatmul.f32.gmra.mxu0 %v194
    %v253 = vpop.f32.mrf.mxu0
    %v254 = vadd.f32 0.0, %v253
    %255 = vdwg.mxu0
    %256 = vmatpush.msra.mxu0 0.0
    %257 = vmatpush.msra.mxu0 0.0
    %258 = vmatpush.msra.mxu0 0.0
    %259 = vmatpush.msra.mxu0 0.0
    %260 = vmatpush.msra.mxu0 0.0
    %261 = vmatpush.msra.mxu0 0.0
    %262 = vmatpush.msra.mxu0 0.0
    %263 = vmatpush.msra.mxu0 0.0
    %264 = vmatpush.msra.mxu0 0.0
    %265 = vmatpush.msra.mxu0 0.0
    %266 = vmatpush.msra.mxu0 0.0
    %267 = vmatpush.msra.mxu0 0.0
    %268 = vmatpush.msra.mxu0 0.0
    %269 = vmatpush.msra.mxu0 0.0
    %270 = vmatpush.msra.mxu0 %v167
    %271 = vmatpush.msra.mxu0 %v164
    %272 = vmatmul.f32.gmra.mxu0 %v194
    %v273 = vpop.f32.mrf.mxu0
    %v274 = vadd.f32 0.0, %v273
    %275 = vdwg.mxu0
    %276 = vmatpush.msra.mxu0 0.0
    %277 = vmatpush.msra.mxu0 0.0
    %278 = vmatpush.msra.mxu0 0.0
    %279 = vmatpush.msra.mxu0 0.0
    %280 = vmatpush.msra.mxu0 0.0
    %281 = vmatpush.msra.mxu0 0.0
    %282 = vmatpush.msra.mxu0 0.0
    %283 = vmatpush.msra.mxu0 0.0
    %284 = vmatpush.msra.mxu0 0.0
    %285 = vmatpush.msra.mxu0 0.0
    %286 = vmatpush.msra.mxu0 0.0
    %287 = vmatpush.msra.mxu0 0.0
    %288 = vmatpush.msra.mxu0 0.0
    %289 = vmatpush.msra.mxu0 0.0
    %290 = vmatpush.msra.mxu0 %v173
    %291 = vmatpush.msra.mxu0 %v170
    %292 = vmatmul.f32.gmra.mxu0 %v194
    %v293 = vpop.f32.mrf.mxu0
    %v294 = vadd.f32 0.0, %v293
    %295 = vdwg.mxu0
    %296 = vmatpush.msra.mxu0 0.0
    %297 = vmatpush.msra.mxu0 0.0
    %298 = vmatpush.msra.mxu0 0.0
    %299 = vmatpush.msra.mxu0 0.0
    %300 = vmatpush.msra.mxu0 0.0
    %301 = vmatpush.msra.mxu0 0.0
    %302 = vmatpush.msra.mxu0 0.0
    %303 = vmatpush.msra.mxu0 0.0
    %304 = vmatpush.msra.mxu0 0.0
    %305 = vmatpush.msra.mxu0 0.0
    %306 = vmatpush.msra.mxu0 0.0
    %307 = vmatpush.msra.mxu0 0.0
    %308 = vmatpush.msra.mxu0 0.0
    %309 = vmatpush.msra.mxu0 0.0
    %310 = vmatpush.msra.mxu0 %v179
    %311 = vmatpush.msra.mxu0 %v176
    %312 = vmatmul.f32.gmra.mxu0 %v194
    %v313 = vpop.f32.mrf.mxu0
    %v314 = vadd.f32 0.0, %v313
    %315 = vdwg.mxu0
    %316 = vmatpush.msra.mxu0 0.0
    %317 = vmatpush.msra.mxu0 0.0
    %318 = vmatpush.msra.mxu0 0.0
    %319 = vmatpush.msra.mxu0 0.0
    %320 = vmatpush.msra.mxu0 0.0
    %321 = vmatpush.msra.mxu0 0.0
    %322 = vmatpush.msra.mxu0 0.0
    %323 = vmatpush.msra.mxu0 0.0
    %324 = vmatpush.msra.mxu0 0.0
    %325 = vmatpush.msra.mxu0 0.0
    %326 = vmatpush.msra.mxu0 0.0
    %327 = vmatpush.msra.mxu0 0.0
    %328 = vmatpush.msra.mxu0 0.0
    %329 = vmatpush.msra.mxu0 0.0
    %330 = vmatpush.msra.mxu0 %v185
    %331 = vmatpush.msra.mxu0 %v182
    %332 = vmatmul.f32.gmra.mxu0 %v194
    %v333 = vpop.f32.mrf.mxu0
    %v334 = vadd.f32 0.0, %v333
    %335 = vdwg.mxu0
    %336 = vmatpush.msra.mxu0 0.0
    %337 = vmatpush.msra.mxu0 0.0
    %338 = vmatpush.msra.mxu0 0.0
    %339 = vmatpush.msra.mxu0 0.0
    %340 = vmatpush.msra.mxu0 0.0
    %341 = vmatpush.msra.mxu0 0.0
    %342 = vmatpush.msra.mxu0 0.0
    %343 = vmatpush.msra.mxu0 0.0
    %344 = vmatpush.msra.mxu0 0.0
    %345 = vmatpush.msra.mxu0 0.0
    %346 = vmatpush.msra.mxu0 0.0
    %347 = vmatpush.msra.mxu0 0.0
    %348 = vmatpush.msra.mxu0 0.0
    %349 = vmatpush.msra.mxu0 0.0
    %350 = vmatpush.msra.mxu0 %v191
    %351 = vmatpush.msra.mxu0 %v188
    %352 = vmatmul.f32.gmra.mxu0 %v194
    %v353 = vpop.f32.mrf.mxu0
    %v354 = vadd.f32 0.0, %v353
    %355 = vdwg.mxu0
    %vm356 = vcmask 64512
    %357 = vst.msk [vmem:[#allocation8] sm:$0xff] %vm356, %v214
    %358 = vst.msk [vmem:[#allocation8 + $0x8] sm:$0xff] %vm356, %v234
    %359 = vst.msk [vmem:[#allocation8 + $0x10] sm:$0xff] %vm356, %v254
    %360 = vst.msk [vmem:[#allocation8 + $0x18] sm:$0xff] %vm356, %v274
    %361 = vst.msk [vmem:[#allocation8 + $0x20] sm:$0xff] %vm356, %v294
    %362 = vst.msk [vmem:[#allocation8 + $0x28] sm:$0xff] %vm356, %v314
    %363 = vst.msk [vmem:[#allocation8 + $0x30] sm:$0xff] %vm356, %v334
    %364 = vst.msk [vmem:[#allocation8 + $0x38] sm:$0xff] %vm356, %v354
    // Predicated region
    $region26: #{_lambda_.1} parent=1 // pred_check
      _
    $region27: #{_lambda_.1} parent=1 // pred_check_branch
      %366 = sbr.rel (0) target = $region29
    $region28: #{_lambda_.1} parent=1 // pred_region
      %368 = vsyncadd [#allocation4], 0
      %s369 = sshll.u32 [#allocation8], 4
      %s370 = int_to_ptr.vmem [resolvable:$true] %s369
      %s371 = sshll.u32 %s3, 4
      %s372 = int_to_ptr.hbm [resolvable:$true] %s371
      %377 = dma.vmem_to_hbm [thread:$0]  %s370, 1024, %s372, [#allocation4], 128, 128, 8
    $region29: #{_lambda_.1} parent=1 // pred_fallthru
      _
    // Predicated region
    $region30: #{_lambda_.1} parent=1 // pred_check
      _
    $region31: #{_lambda_.1} parent=1 // pred_check_branch
      %379 = sbr.rel (0) target = $region33
    $region32: #{_lambda_.1} parent=1 // pred_region
      %381 = dma.done [#allocation4], 1024
    $region33: #{_lambda_.1} parent=1 // pred_fallthru
      _
    %382 = vsyncpa [#allocation3], 1
    %383 = vsyncpa [#allocation6], 1
    %384 = vsyncpa [#allocation4], 1

</llo_original>
